<compile_context>
chip_gen: v7x
topology: tpu7x:2x2x1
jax: 0.10.0
libtpu: 0.0.40
codegen_flags: <defaults>
</compile_context>

<pallas_src>
import functools
import numpy as np
import jax
import jax.numpy as jnp
from jax.experimental import pallas as pl
from jax.experimental.pallas import tpu as pltpu


def _dense_grid_kernel(xyz_min_ref, scale_ref, xyz_ref, grid_ref, hw_row_ref,
                       d_row_ref, *rest, D, H, W, use_segsum):
    # xyz_min_ref/scale_ref: (3,) f32 SMEM scalars
    # xyz_ref:    (8, TN) f32 VMEM block (rows 0..2 = x,y,z; rows 3..7 padding)
    # grid_ref:   (C*D, H*W) VMEM resident voxel grid
    # hw_row_ref: (H*W, 1) i32 VMEM resident row index (y*W + z per row)
    # d_row_ref:  (C*D, 1) i32 VMEM resident d index of each grid row
    # rest: (out_ref,) when use_segsum else (sel_ref, out_ref)
    if use_segsum:
        (out_ref,) = rest
        sel_ref = None
    else:
        sel_ref, out_ref = rest
    C = out_ref.shape[0]
    TN = out_ref.shape[1]

    # voxel-space positions; (S_i - 1)/(max_i - min_i) is pre-folded into scale.
    px = (xyz_ref[0:1, :] - xyz_min_ref[0]) * scale_ref[0]   # -> D axis
    py = (xyz_ref[1:2, :] - xyz_min_ref[1]) * scale_ref[1]   # -> H axis
    pz = (xyz_ref[2:3, :] - xyz_min_ref[2]) * scale_ref[2]   # -> W axis

    x0 = jnp.floor(px)
    y0 = jnp.floor(py)
    z0 = jnp.floor(pz)
    fx = px - x0
    fy = py - y0
    fz = pz - z0
    ix0 = x0.astype(jnp.int32)
    iy0 = y0.astype(jnp.int32)
    iz0 = z0.astype(jnp.int32)

    # --- Wyz (HW, TN): bilinear H/W factor, <=4 nonzeros per column -----------
    # Corner rows are flat0 + {0, 1, W, W+1}; validity is folded into the
    # weights, so any aliased (out-of-range) row contributes exactly 0.
    flat0 = iy0 * W + iz0                                     # (1, TN) unclipped
    delta = hw_row_ref[...] - flat0                           # (HW, TN) int32

    vy0 = (iy0 >= 0) & (iy0 < H)
    vy1 = ((iy0 + 1) >= 0) & ((iy0 + 1) < H)
    vz0 = (iz0 >= 0) & (iz0 < W)
    vz1 = ((iz0 + 1) >= 0) & ((iz0 + 1) < W)
    gy0 = 1.0 - fy
    gz0 = 1.0 - fz
    w00 = gy0 * gz0 * (vy0 & vz0).astype(jnp.float32)
    w01 = gy0 * fz * (vy0 & vz1).astype(jnp.float32)
    w10 = fy * gz0 * (vy1 & vz0).astype(jnp.float32)
    w11 = fy * fz * (vy1 & vz1).astype(jnp.float32)

    wyz = jnp.where(delta == 0, w00, jnp.where(delta == 1, w01, 0.0))
    wyz = wyz + jnp.where(delta == W, w10, jnp.where(delta == W + 1, w11, 0.0))

    # --- Wx (CD, TN): linear D factor expanded over channels, <=2 nonzeros ----
    d_delta = d_row_ref[...] - ix0                            # (CD, TN) int32
    vx0 = (ix0 >= 0) & (ix0 < D)
    vx1 = ((ix0 + 1) >= 0) & ((ix0 + 1) < D)
    wx0 = (1.0 - fx) * vx0.astype(jnp.float32)
    wx1 = fx * vx1.astype(jnp.float32)
    wx = jnp.where(d_delta == 0, wx0, jnp.where(d_delta == 1, wx1, 0.0))

    # --- (CD, HW) @ (HW, TN) on the MXU -> apply Wx -> segment-sum over D -----
    t1 = jnp.dot(grid_ref[...], wyz.astype(grid_ref.dtype),
                 preferred_element_type=jnp.float32)
    t = t1 * wx
    if use_segsum:
        out_ref[...] = t.reshape(C, D, TN).sum(axis=1)        # XLU sublane reduce
    else:
        out_ref[...] = jnp.dot(sel_ref[...], t, preferred_element_type=jnp.float32)


def _tpu_generation():
    """Returns (tensorcores_per_chip, temp_budget_bytes, vmem_limit_cap_bytes)."""
    kind = ""
    try:
        kind = (getattr(jax.devices()[0], "device_kind", "") or "").lower()
    except Exception:
        pass
    is_v7 = "v7" in kind
    num_tc = 2 if is_v7 else 1                       # v5e/v6e: 1 TC; v7x: 2 TCs
    temp_budget = (8 if is_v7 else 16) * 1024 * 1024
    limit_cap = (48 if is_v7 else 100) * 1024 * 1024  # scoped-VMEM clamp per gen
    return num_tc, temp_budget, limit_cap


def dense_grid_forward(xyz, grid, xyz_min, xyz_max, *, block_n=None, grid_dtype=None):
    """xyz: (..., 3); grid: (1, C, D, H, W); returns (..., C) (squeezed if C == 1)."""
    shape = xyz.shape[:-1]
    C = int(grid.shape[1])
    D, H, W = (int(s) for s in grid.shape[2:])
    HW, CD = H * W, C * D
    N = int(np.prod(shape)) if len(shape) > 0 else 1

    num_tc, temp_budget, limit_cap = _tpu_generation()

    def rup(a, m):
        return ((a + m - 1) // m) * m

    # Per-block VMEM temp footprint: wyz/delta + where temps on the (HW,TN) side,
    # wx/d_delta/t on the (CD,TN) side, plus xyz/out blocks (double-buffered).
    def temp_bytes(bn):
        return 4 * bn * (3 * rup(HW, 8) + 3 * rup(CD, 8) + 2 * 8 + 2 * rup(C, 8))

    use_segsum = (D % 8 == 0)   # sublane segment-sum is layout-clean only then

    gdtype = jnp.float32 if grid_dtype is None else jnp.dtype(grid_dtype)
    gitem = jnp.dtype(gdtype).itemsize
    resident = (rup(CD, 8) * rup(HW, 128) * gitem       # voxel grid
                + rup(HW, 8) * 128 * 4                  # hw_row
                + rup(CD, 8) * 128 * 4)                 # d_row
    if not use_segsum:
        resident += rup(C, 8) * rup(CD, 128) * 4        # sel

    if resident + temp_bytes(128) > limit_cap:
        # TODO(synk): HBM-resident corner-gather path for grids too large for VMEM.
        raise NotImplementedError(
            f"voxel grid footprint {resident / 2**20:.1f} MiB exceeds the "
            "VMEM-resident fast path; an HBM-gather kernel is required")

    # Largest lane-dense block within the per-generation temp budget (cap 4096),
    # but never over-pad tiny query sets.
    if block_n is None:
        bn = 128
        while bn < 4096 and temp_bytes(bn * 2) <= temp_budget:
            bn *= 2
        block_n = bn
    else:
        block_n = max(128, (int(block_n) // 128) * 128)
        while block_n > 128 and temp_bytes(block_n) > temp_budget:
            block_n //= 2
    block_n = min(block_n, max(128, rup(N, 128)))

    num_blocks = int(pl.cdiv(N, block_n))
    if num_tc > 1 and num_blocks > 1 and num_blocks % num_tc != 0:
        num_blocks += num_tc - (num_blocks % num_tc)    # keep both v7x TCs busy
    n_pad = num_blocks * block_n

    xyz_flat = jnp.reshape(xyz, (N, 3)).astype(jnp.float32)
    # (8, n_pad): sublane-aligned; rows 0..2 hold x,y,z, rows 3..7 are padding.
    xyz_t = jnp.pad(xyz_flat.T, ((0, 5), (0, n_pad - N)))

    grid_flat = jnp.reshape(grid[0], (CD, HW)).astype(gdtype)
    hw_row = jnp.arange(HW, dtype=jnp.int32).reshape(HW, 1)
    d_row = jnp.asarray(np.tile(np.arange(D, dtype=np.int32), C).reshape(CD, 1))

    xyz_min_a = jnp.reshape(jnp.asarray(xyz_min, jnp.float32), (3,))
    xyz_max_a = jnp.reshape(jnp.asarray(xyz_max, jnp.float32), (3,))
    sizes = jnp.asarray([D - 1, H - 1, W - 1], jnp.float32)
    scale = sizes / (xyz_max_a - xyz_min_a)             # fold align_corners (S-1) in

    operands = [xyz_min_a, scale, xyz_t, grid_flat, hw_row, d_row]
    in_specs = [
        pl.BlockSpec(memory_space=pltpu.MemorySpace.SMEM),   # xyz_min (3,)
        pl.BlockSpec(memory_space=pltpu.MemorySpace.SMEM),   # scale   (3,)
        pl.BlockSpec((8, block_n), lambda i: (0, i)),        # xyz tile
        pl.BlockSpec(memory_space=pltpu.MemorySpace.VMEM),   # grid, resident
        pl.BlockSpec(memory_space=pltpu.MemorySpace.VMEM),   # hw_row, resident
        pl.BlockSpec(memory_space=pltpu.MemorySpace.VMEM),   # d_row, resident
    ]
    if not use_segsum:
        sel = jnp.asarray(np.repeat(np.eye(C, dtype=np.float32), D, axis=1))  # (C, C*D)
        operands.append(sel)
        in_specs.append(pl.BlockSpec(memory_space=pltpu.MemorySpace.VMEM))

    # Always set an explicit scoped-VMEM limit (the 16/32 MiB default is the
    # first thing a moderately sized resident grid would trip over).
    vmem_limit = int(min(limit_cap,
                         max(2 * 1024 * 1024,
                             resident + 2 * temp_bytes(block_n) + (4 << 20))))

    kernel = functools.partial(_dense_grid_kernel, D=D, H=H, W=W,
                               use_segsum=use_segsum)
    out = pl.pallas_call(
        kernel,
        out_shape=jax.ShapeDtypeStruct((C, n_pad), jnp.float32),
        grid_spec=pltpu.PrefetchScalarGridSpec(
            num_scalar_prefetch=0,
            grid=(num_blocks,),
            in_specs=in_specs,
            out_specs=pl.BlockSpec((C, block_n), lambda i: (0, i)),
        ),
        compiler_params=pltpu.CompilerParams(
            dimension_semantics=("parallel",),
            vmem_limit_bytes=vmem_limit,
        ),
    )(*operands)

    out = out[:, :N].T.reshape(*shape, C)
    if C == 1:
        out = out.squeeze(-1)
    return out


def _reference_numpy(xyz, grid, xyz_min, xyz_max):
    """Pure-numpy grid_sample(trilinear, align_corners=True, padding_mode='zeros')."""
    shape = xyz.shape[:-1]
    C = grid.shape[1]
    D, H, W = grid.shape[2:]
    p = (xyz.reshape(-1, 3).astype(np.float64) - xyz_min) / (xyz_max - xyz_min)
    pd = p[:, 0] * (D - 1)
    ph = p[:, 1] * (H - 1)
    pw = p[:, 2] * (W - 1)
    i0 = np.floor(pd).astype(np.int64)
    j0 = np.floor(ph).astype(np.int64)
    k0 = np.floor(pw).astype(np.int64)
    fd, fh, fw = pd - i0, ph - j0, pw - k0
    g = grid[0]  # (C, D, H, W)
    out = np.zeros((p.shape[0], C), np.float64)
    for dd in (0, 1):
        for dh in (0, 1):
            for dw in (0, 1):
                ii, jj, kk = i0 + dd, j0 + dh, k0 + dw
                w = (fd if dd else 1 - fd) * (fh if dh else 1 - fh) * (fw if dw else 1 - fw)
                valid = (ii >= 0) & (ii < D) & (jj >= 0) & (jj < H) & (kk >= 0) & (kk < W)
                iic = np.clip(ii, 0, D - 1)
                jjc = np.clip(jj, 0, H - 1)
                kkc = np.clip(kk, 0, W - 1)
                vals = g[:, iic, jjc, kkc].T  # (N, C)
                out += (w * valid)[:, None] * vals
    out = out.reshape(*shape, C)
    if C == 1:
        out = out.squeeze(-1)
    return out.astype(np.float32)


if __name__ == "__main__":
    key = jax.random.PRNGKey(0)
    channels = 4
    world_size = (6, 7, 8)
    xyz_min = jnp.array([-1.0, -1.0, -1.0], jnp.float32)
    xyz_max = jnp.array([1.0, 1.0, 1.0], jnp.float32)

    kg, kx = jax.random.split(key)
    # nn.Parameter(torch.zeros(...)) would be all-zeros; use deterministic random
    # values instead so the test exercises real interpolation.
    grid = jax.random.normal(kg, (1, channels) + world_size, jnp.float32)
    # queries slightly outside the bbox too, to exercise zero padding
    xyz = jax.random.uniform(kx, (2, 50, 3), jnp.float32, minval=-1.2, maxval=1.2)

    out = dense_grid_forward(xyz, grid, xyz_min, xyz_max)
    out = jax.block_until_ready(out)

    ref = _reference_numpy(
        np.asarray(xyz), np.asarray(grid), np.asarray(xyz_min), np.asarray(xyz_max)
    )
    assert out.shape == ref.shape, (out.shape, ref.shape)
    np.testing.assert_allclose(np.asarray(out), ref, rtol=1e-4, atol=1e-5)
    print("KERNEL_OK")
</pallas_src>

<mosaic_0001>
module attributes {stable_mosaic.version = 11 : i64} {
  func.func @_dense_grid_kernel(%arg0: i32, %arg1: memref<3xf32, #tpu.memory_space<smem>>, %arg2: memref<3xf32, #tpu.memory_space<smem>>, %arg3: memref<8x128xf32, #tpu.memory_space<vmem>>, %arg4: memref<24x56xf32, #tpu.memory_space<vmem>>, %arg5: memref<56x1xi32, #tpu.memory_space<vmem>>, %arg6: memref<24x1xi32, #tpu.memory_space<vmem>>, %arg7: memref<4x24xf32, #tpu.memory_space<vmem>>, %arg8: memref<4x128xf32, #tpu.memory_space<vmem>>) attributes {dimension_semantics = [#tpu.dimension_semantics<parallel>], iteration_bounds = array<i64: 1>, scalar_prefetch = 0 : i64, scratch_operands = 0 : i64, tpu.core_type = #tpu.core_type<tc>, window_params = [{transform_indices = @transform_0, window_bounds = array<i64: 3>}, {transform_indices = @transform_1, window_bounds = array<i64: 3>}, {transform_indices = @transform_2, window_bounds = array<i64: 8, 128>}, {pipeline_mode = #tpu.pipeline_mode<synchronous>, transform_indices = @transform_3, window_bounds = array<i64: 24, 56>}, {pipeline_mode = #tpu.pipeline_mode<synchronous>, transform_indices = @transform_4, window_bounds = array<i64: 56, 1>}, {pipeline_mode = #tpu.pipeline_mode<synchronous>, transform_indices = @transform_5, window_bounds = array<i64: 24, 1>}, {pipeline_mode = #tpu.pipeline_mode<synchronous>, transform_indices = @transform_6, window_bounds = array<i64: 4, 24>}, {transform_indices = @transform_7, window_bounds = array<i64: 4, 128>}]} {
    %c0 = arith.constant 0 : index
    %c0_0 = arith.constant 0 : index
    %0 = vector.load %arg3[%c0, %c0_0] : memref<8x128xf32, #tpu.memory_space<vmem>>, vector<1x128xf32>
    %c0_1 = arith.constant 0 : index
    %1 = memref.load %arg1[%c0_1] : memref<3xf32, #tpu.memory_space<smem>>
    %2 = vector.broadcast %1 : f32 to vector<1x128xf32>
    %3 = arith.subf %0, %2 : vector<1x128xf32>
    %c0_2 = arith.constant 0 : index
    %4 = memref.load %arg2[%c0_2] : memref<3xf32, #tpu.memory_space<smem>>
    %5 = vector.broadcast %4 : f32 to vector<1x128xf32>
    %6 = arith.mulf %3, %5 : vector<1x128xf32>
    %c1 = arith.constant 1 : index
    %c0_3 = arith.constant 0 : index
    %7 = vector.load %arg3[%c1, %c0_3] : memref<8x128xf32, #tpu.memory_space<vmem>>, vector<1x128xf32>
    %c1_4 = arith.constant 1 : index
    %8 = memref.load %arg1[%c1_4] : memref<3xf32, #tpu.memory_space<smem>>
    %9 = vector.broadcast %8 : f32 to vector<1x128xf32>
    %10 = arith.subf %7, %9 : vector<1x128xf32>
    %c1_5 = arith.constant 1 : index
    %11 = memref.load %arg2[%c1_5] : memref<3xf32, #tpu.memory_space<smem>>
    %12 = vector.broadcast %11 : f32 to vector<1x128xf32>
    %13 = arith.mulf %10, %12 : vector<1x128xf32>
    %c2 = arith.constant 2 : index
    %c0_6 = arith.constant 0 : index
    %14 = vector.load %arg3[%c2, %c0_6] : memref<8x128xf32, #tpu.memory_space<vmem>>, vector<1x128xf32>
    %c2_7 = arith.constant 2 : index
    %15 = memref.load %arg1[%c2_7] : memref<3xf32, #tpu.memory_space<smem>>
    %16 = vector.broadcast %15 : f32 to vector<1x128xf32>
    %17 = arith.subf %14, %16 : vector<1x128xf32>
    %c2_8 = arith.constant 2 : index
    %18 = memref.load %arg2[%c2_8] : memref<3xf32, #tpu.memory_space<smem>>
    %19 = vector.broadcast %18 : f32 to vector<1x128xf32>
    %20 = arith.mulf %17, %19 : vector<1x128xf32>
    %21 = math.floor %6 : vector<1x128xf32>
    %22 = math.floor %13 : vector<1x128xf32>
    %23 = math.floor %20 : vector<1x128xf32>
    %24 = arith.subf %6, %21 : vector<1x128xf32>
    %25 = arith.subf %13, %22 : vector<1x128xf32>
    %26 = arith.subf %20, %23 : vector<1x128xf32>
    %27 = arith.fptosi %21 : vector<1x128xf32> to vector<1x128xi32>
    %28 = arith.fptosi %22 : vector<1x128xf32> to vector<1x128xi32>
    %29 = arith.fptosi %23 : vector<1x128xf32> to vector<1x128xi32>
    %c8_i32 = arith.constant 8 : i32
    %30 = vector.broadcast %c8_i32 : i32 to vector<1x128xi32>
    %31 = arith.muli %28, %30 : vector<1x128xi32>
    %32 = arith.addi %31, %29 : vector<1x128xi32>
    %c0_9 = arith.constant 0 : index
    %c0_10 = arith.constant 0 : index
    %33 = vector.load %arg5[%c0_9, %c0_10] : memref<56x1xi32, #tpu.memory_space<vmem>>, vector<56x1xi32>
    %34 = vector.broadcast %33 : vector<56x1xi32> to vector<56x128xi32>
    %35 = vector.broadcast %32 : vector<1x128xi32> to vector<56x128xi32>
    %36 = arith.subi %34, %35 : vector<56x128xi32>
    %c0_i32 = arith.constant 0 : i32
    %37 = vector.broadcast %c0_i32 : i32 to vector<1x128xi32>
    %38 = arith.cmpi sge, %28, %37 : vector<1x128xi32>
    %c7_i32 = arith.constant 7 : i32
    %39 = vector.broadcast %c7_i32 : i32 to vector<1x128xi32>
    %40 = arith.cmpi slt, %28, %39 : vector<1x128xi32>
    %41 = arith.andi %38, %40 : vector<1x128xi1>
    %c1_i32 = arith.constant 1 : i32
    %42 = vector.broadcast %c1_i32 : i32 to vector<1x128xi32>
    %43 = arith.addi %28, %42 : vector<1x128xi32>
    %c0_i32_11 = arith.constant 0 : i32
    %44 = vector.broadcast %c0_i32_11 : i32 to vector<1x128xi32>
    %45 = arith.cmpi sge, %43, %44 : vector<1x128xi32>
    %c1_i32_12 = arith.constant 1 : i32
    %46 = vector.broadcast %c1_i32_12 : i32 to vector<1x128xi32>
    %47 = arith.addi %28, %46 : vector<1x128xi32>
    %c7_i32_13 = arith.constant 7 : i32
    %48 = vector.broadcast %c7_i32_13 : i32 to vector<1x128xi32>
    %49 = arith.cmpi slt, %47, %48 : vector<1x128xi32>
    %50 = arith.andi %45, %49 : vector<1x128xi1>
    %c0_i32_14 = arith.constant 0 : i32
    %51 = vector.broadcast %c0_i32_14 : i32 to vector<1x128xi32>
    %52 = arith.cmpi sge, %29, %51 : vector<1x128xi32>
    %c8_i32_15 = arith.constant 8 : i32
    %53 = vector.broadcast %c8_i32_15 : i32 to vector<1x128xi32>
    %54 = arith.cmpi slt, %29, %53 : vector<1x128xi32>
    %55 = arith.andi %52, %54 : vector<1x128xi1>
    %c1_i32_16 = arith.constant 1 : i32
    %56 = vector.broadcast %c1_i32_16 : i32 to vector<1x128xi32>
    %57 = arith.addi %29, %56 : vector<1x128xi32>
    %c0_i32_17 = arith.constant 0 : i32
    %58 = vector.broadcast %c0_i32_17 : i32 to vector<1x128xi32>
    %59 = arith.cmpi sge, %57, %58 : vector<1x128xi32>
    %c1_i32_18 = arith.constant 1 : i32
    %60 = vector.broadcast %c1_i32_18 : i32 to vector<1x128xi32>
    %61 = arith.addi %29, %60 : vector<1x128xi32>
    %c8_i32_19 = arith.constant 8 : i32
    %62 = vector.broadcast %c8_i32_19 : i32 to vector<1x128xi32>
    %63 = arith.cmpi slt, %61, %62 : vector<1x128xi32>
    %64 = arith.andi %59, %63 : vector<1x128xi1>
    %cst = arith.constant 1.000000e+00 : f32
    %65 = vector.broadcast %cst : f32 to vector<1x128xf32>
    %66 = arith.subf %65, %25 : vector<1x128xf32>
    %cst_20 = arith.constant 1.000000e+00 : f32
    %67 = vector.broadcast %cst_20 : f32 to vector<1x128xf32>
    %68 = arith.subf %67, %26 : vector<1x128xf32>
    %69 = arith.mulf %66, %68 : vector<1x128xf32>
    %70 = arith.andi %41, %55 : vector<1x128xi1>
    %71 = arith.extui %70 : vector<1x128xi1> to vector<1x128xi32>
    %72 = arith.sitofp %71 : vector<1x128xi32> to vector<1x128xf32>
    %73 = arith.mulf %69, %72 : vector<1x128xf32>
    %74 = arith.mulf %66, %26 : vector<1x128xf32>
    %75 = arith.andi %41, %64 : vector<1x128xi1>
    %76 = arith.extui %75 : vector<1x128xi1> to vector<1x128xi32>
    %77 = arith.sitofp %76 : vector<1x128xi32> to vector<1x128xf32>
    %78 = arith.mulf %74, %77 : vector<1x128xf32>
    %79 = arith.mulf %25, %68 : vector<1x128xf32>
    %80 = arith.andi %50, %55 : vector<1x128xi1>
    %81 = arith.extui %80 : vector<1x128xi1> to vector<1x128xi32>
    %82 = arith.sitofp %81 : vector<1x128xi32> to vector<1x128xf32>
    %83 = arith.mulf %79, %82 : vector<1x128xf32>
    %84 = arith.mulf %25, %26 : vector<1x128xf32>
    %85 = arith.andi %50, %64 : vector<1x128xi1>
    %86 = arith.extui %85 : vector<1x128xi1> to vector<1x128xi32>
    %87 = arith.sitofp %86 : vector<1x128xi32> to vector<1x128xf32>
    %88 = arith.mulf %84, %87 : vector<1x128xf32>
    %c0_i32_21 = arith.constant 0 : i32
    %89 = vector.broadcast %c0_i32_21 : i32 to vector<56x128xi32>
    %90 = arith.cmpi eq, %36, %89 : vector<56x128xi32>
    %c1_i32_22 = arith.constant 1 : i32
    %91 = vector.broadcast %c1_i32_22 : i32 to vector<56x128xi32>
    %92 = arith.cmpi eq, %36, %91 : vector<56x128xi32>
    %cst_23 = arith.constant 0.000000e+00 : f32
    %93 = vector.shape_cast %78 : vector<1x128xf32> to vector<1x128xf32>
    %94 = vector.broadcast %93 : vector<1x128xf32> to vector<56x128xf32>
    %95 = vector.broadcast %cst_23 : f32 to vector<56x128xf32>
    %96 = arith.select %92, %94, %95 : vector<56x128xi1>, vector<56x128xf32>
    %97 = vector.shape_cast %73 : vector<1x128xf32> to vector<1x128xf32>
    %98 = vector.broadcast %97 : vector<1x128xf32> to vector<56x128xf32>
    %99 = arith.select %90, %98, %96 : vector<56x128xi1>, vector<56x128xf32>
    %c8_i32_24 = arith.constant 8 : i32
    %100 = vector.broadcast %c8_i32_24 : i32 to vector<56x128xi32>
    %101 = arith.cmpi eq, %36, %100 : vector<56x128xi32>
    %c9_i32 = arith.constant 9 : i32
    %102 = vector.broadcast %c9_i32 : i32 to vector<56x128xi32>
    %103 = arith.cmpi eq, %36, %102 : vector<56x128xi32>
    %cst_25 = arith.constant 0.000000e+00 : f32
    %104 = vector.shape_cast %88 : vector<1x128xf32> to vector<1x128xf32>
    %105 = vector.broadcast %104 : vector<1x128xf32> to vector<56x128xf32>
    %106 = vector.broadcast %cst_25 : f32 to vector<56x128xf32>
    %107 = arith.select %103, %105, %106 : vector<56x128xi1>, vector<56x128xf32>
    %108 = vector.shape_cast %83 : vector<1x128xf32> to vector<1x128xf32>
    %109 = vector.broadcast %108 : vector<1x128xf32> to vector<56x128xf32>
    %110 = arith.select %101, %109, %107 : vector<56x128xi1>, vector<56x128xf32>
    %111 = arith.addf %99, %110 : vector<56x128xf32>
    %c0_26 = arith.constant 0 : index
    %c0_27 = arith.constant 0 : index
    %112 = vector.load %arg6[%c0_26, %c0_27] : memref<24x1xi32, #tpu.memory_space<vmem>>, vector<24x1xi32>
    %113 = vector.broadcast %112 : vector<24x1xi32> to vector<24x128xi32>
    %114 = vector.broadcast %27 : vector<1x128xi32> to vector<24x128xi32>
    %115 = arith.subi %113, %114 : vector<24x128xi32>
    %c0_i32_28 = arith.constant 0 : i32
    %116 = vector.broadcast %c0_i32_28 : i32 to vector<1x128xi32>
    %117 = arith.cmpi sge, %27, %116 : vector<1x128xi32>
    %c6_i32 = arith.constant 6 : i32
    %118 = vector.broadcast %c6_i32 : i32 to vector<1x128xi32>
    %119 = arith.cmpi slt, %27, %118 : vector<1x128xi32>
    %120 = arith.andi %117, %119 : vector<1x128xi1>
    %c1_i32_29 = arith.constant 1 : i32
    %121 = vector.broadcast %c1_i32_29 : i32 to vector<1x128xi32>
    %122 = arith.addi %27, %121 : vector<1x128xi32>
    %c0_i32_30 = arith.constant 0 : i32
    %123 = vector.broadcast %c0_i32_30 : i32 to vector<1x128xi32>
    %124 = arith.cmpi sge, %122, %123 : vector<1x128xi32>
    %c1_i32_31 = arith.constant 1 : i32
    %125 = vector.broadcast %c1_i32_31 : i32 to vector<1x128xi32>
    %126 = arith.addi %27, %125 : vector<1x128xi32>
    %c6_i32_32 = arith.constant 6 : i32
    %127 = vector.broadcast %c6_i32_32 : i32 to vector<1x128xi32>
    %128 = arith.cmpi slt, %126, %127 : vector<1x128xi32>
    %129 = arith.andi %124, %128 : vector<1x128xi1>
    %cst_33 = arith.constant 1.000000e+00 : f32
    %130 = vector.broadcast %cst_33 : f32 to vector<1x128xf32>
    %131 = arith.subf %130, %24 : vector<1x128xf32>
    %132 = arith.extui %120 : vector<1x128xi1> to vector<1x128xi32>
    %133 = arith.sitofp %132 : vector<1x128xi32> to vector<1x128xf32>
    %134 = arith.mulf %131, %133 : vector<1x128xf32>
    %135 = arith.extui %129 : vector<1x128xi1> to vector<1x128xi32>
    %136 = arith.sitofp %135 : vector<1x128xi32> to vector<1x128xf32>
    %137 = arith.mulf %24, %136 : vector<1x128xf32>
    %c0_i32_34 = arith.constant 0 : i32
    %138 = vector.broadcast %c0_i32_34 : i32 to vector<24x128xi32>
    %139 = arith.cmpi eq, %115, %138 : vector<24x128xi32>
    %c1_i32_35 = arith.constant 1 : i32
    %140 = vector.broadcast %c1_i32_35 : i32 to vector<24x128xi32>
    %141 = arith.cmpi eq, %115, %140 : vector<24x128xi32>
    %cst_36 = arith.constant 0.000000e+00 : f32
    %142 = vector.shape_cast %137 : vector<1x128xf32> to vector<1x128xf32>
    %143 = vector.broadcast %142 : vector<1x128xf32> to vector<24x128xf32>
    %144 = vector.broadcast %cst_36 : f32 to vector<24x128xf32>
    %145 = arith.select %141, %143, %144 : vector<24x128xi1>, vector<24x128xf32>
    %146 = vector.shape_cast %134 : vector<1x128xf32> to vector<1x128xf32>
    %147 = vector.broadcast %146 : vector<1x128xf32> to vector<24x128xf32>
    %148 = arith.select %139, %147, %145 : vector<24x128xi1>, vector<24x128xf32>
    %c0_37 = arith.constant 0 : index
    %c0_38 = arith.constant 0 : index
    %149 = vector.load %arg4[%c0_37, %c0_38] : memref<24x56xf32, #tpu.memory_space<vmem>>, vector<24x56xf32>
    %cst_39 = arith.constant dense<0.000000e+00> : vector<24x128xf32>
    %150 = tpu.matmul %149, %111, %cst_39 {dimension_numbers = #tpu.dot_dimension_numbers<[1], [0], [0], [1], [0, 0, 1, 1], [], []>} : vector<24x56xf32>, vector<56x128xf32>, vector<24x128xf32> -> vector<24x128xf32>
    %151 = arith.mulf %150, %148 : vector<24x128xf32>
    %c0_40 = arith.constant 0 : index
    %c0_41 = arith.constant 0 : index
    %152 = vector.load %arg7[%c0_40, %c0_41] : memref<4x24xf32, #tpu.memory_space<vmem>>, vector<4x24xf32>
    %cst_42 = arith.constant dense<0.000000e+00> : vector<4x128xf32>
    %153 = tpu.matmul %152, %151, %cst_42 {dimension_numbers = #tpu.dot_dimension_numbers<[1], [0], [0], [1], [0, 0, 1, 1], [], []>} : vector<4x24xf32>, vector<24x128xf32>, vector<4x128xf32> -> vector<4x128xf32>
    %c0_43 = arith.constant 0 : index
    %c0_44 = arith.constant 0 : index
    %154 = vector.load %arg8[%c0_43, %c0_44] : memref<4x128xf32, #tpu.memory_space<vmem>>, vector<4x128xf32>
    tpu.vector_store %arg8[%c0_43, %c0_44], %153 {strides = array<i32>} : memref<4x128xf32, #tpu.memory_space<vmem>>, vector<4x128xf32>,
    return
  }
  func.func @transform_0(%arg0: i32) -> i32 {
    %c0_i32 = arith.constant 0 : i32
    %c0_i32_0 = arith.constant 0 : i32
    return %c0_i32 : i32
  }
  func.func @transform_1(%arg0: i32) -> i32 {
    %c0_i32 = arith.constant 0 : i32
    %c0_i32_0 = arith.constant 0 : i32
    return %c0_i32 : i32
  }
  func.func @transform_2(%arg0: i32) -> (i32, i32) {
    %c0_i32 = arith.constant 0 : i32
    %c0_i32_0 = arith.constant 0 : i32
    return %c0_i32, %arg0 : i32, i32
  }
  func.func @transform_3(%arg0: i32) -> (i32, i32) {
    %c0_i32 = arith.constant 0 : i32
    %c0_i32_0 = arith.constant 0 : i32
    %c0_i32_1 = arith.constant 0 : i32
    return %c0_i32, %c0_i32_0 : i32, i32
  }
  func.func @transform_4(%arg0: i32) -> (i32, i32) {
    %c0_i32 = arith.constant 0 : i32
    %c0_i32_0 = arith.constant 0 : i32
    %c0_i32_1 = arith.constant 0 : i32
    return %c0_i32, %c0_i32_0 : i32, i32
  }
  func.func @transform_5(%arg0: i32) -> (i32, i32) {
    %c0_i32 = arith.constant 0 : i32
    %c0_i32_0 = arith.constant 0 : i32
    %c0_i32_1 = arith.constant 0 : i32
    return %c0_i32, %c0_i32_0 : i32, i32
  }
  func.func @transform_6(%arg0: i32) -> (i32, i32) {
    %c0_i32 = arith.constant 0 : i32
    %c0_i32_0 = arith.constant 0 : i32
    %c0_i32_1 = arith.constant 0 : i32
    return %c0_i32, %c0_i32_0 : i32, i32
  }
  func.func @transform_7(%arg0: i32) -> (i32, i32) {
    %c0_i32 = arith.constant 0 : i32
    %c0_i32_0 = arith.constant 0 : i32
    return %c0_i32, %arg0 : i32, i32
  }
}

</mosaic_0001>

<llo_original>
// kernel: tpu_custom_call.1
$region0: #{tpu_custom_call.1}
  #allocation0 [shape = 'u32[]', space=smem, size = 0x4, offset = 0x4, fixed_abs, tag = 'smem constant byte address 0x4 - core index']
  #allocation1 [shape = 'u32[144,128]{1,0:T(1,128)}', space=vmem, size = 0x12000, scoped, tag = 'internal scratch']
  %s0 = inlined_call_operand.vmem [shape: f32[3], index: 0, kind: input, shape index: {}]
  %s1 = inlined_call_operand.vmem [shape: f32[3], index: 1, kind: input, shape index: {}]
  %s2 = inlined_call_operand.vmem [shape: f32[8,128], index: 2, kind: input, shape index: {}]
  %s3 = inlined_call_operand.vmem [shape: f32[24,56], index: 3, kind: input, shape index: {}]
  %s4 = inlined_call_operand.vmem [shape: s32[56,1], index: 4, kind: input, shape index: {}]
  %s5 = inlined_call_operand.vmem [shape: s32[24,1], index: 5, kind: input, shape index: {}]
  %s6 = inlined_call_operand.vmem [shape: f32[4,24], index: 6, kind: input, shape index: {}]
  %s7 = inlined_call_operand.hbm [shape: f32[4,128], index: 7, kind: output, shape index: {}]
  %s8 = sld [smem:[#allocation0]]
  $region46: #{tpu_custom_call.1} parent=0
    _
  %s10 = ssub.s32 1, %s8
  %s11 = scalar_select 0, %s10, %s8
  $region1: #{tpu_custom_call.1} parent=0
    #allocation2 [shape = 'u8[512]{0}', space=smem, size = 0x200, scoped, tag = 'input window, operand 0, single buffered']
    #allocation3 [shape = 's32[1]{0}', space=sflag, size = 0x4, scoped, tag = 'scoped memory for tpu_custom_call.1']
    #allocation4 [shape = 's32[1]{0}', space=sflag, size = 0x4, scoped, tag = 'scoped memory for tpu_custom_call.1']
    #allocation5 [shape = 'u8[512]{0}', space=smem, size = 0x200, scoped, tag = 'input window, operand 1, single buffered']
    #allocation6 [shape = 's32[1]{0}', space=sflag, size = 0x4, scoped, tag = 'scoped memory for tpu_custom_call.1']
    #allocation7 [shape = 'u8[2048]{0}', space=vmem, size = 0x800, scoped, tag = 'output window, operand 0, single buffered']
    %12 = vsyncpa [#allocation4], 0
    %13 = vsyncpa [#allocation6], 0
    %14 = vsyncpa [#allocation3], 0
    // Predicated region
    $region2: #{tpu_custom_call.1} parent=1 // pred_check
      _
    $region3: #{tpu_custom_call.1} parent=1 // pred_check_branch
      %16 = sbr.rel (0) target = $region5
    $region4: #{tpu_custom_call.1} parent=1 // pred_region
      %s18 = ssub.s32 16, 16
      %19 = vsyncadd [#allocation4], %s18
      %s21 = sshll.u32 %s0, 4
      %s22 = int_to_ptr.vmem [resolvable:$true] %s21
      %24 = dma.vmem_to_smem %s22, 16, [#allocation2], [#allocation4]
    $region5: #{tpu_custom_call.1} parent=1 // pred_fallthru
      _
    // Predicated region
    $region6: #{tpu_custom_call.1} parent=1 // pred_check
      _
    $region7: #{tpu_custom_call.1} parent=1 // pred_check_branch
      %26 = sbr.rel (0) target = $region9
    $region8: #{tpu_custom_call.1} parent=1 // pred_region
      %s28 = ssub.s32 16, 16
      %29 = vsyncadd [#allocation6], %s28
      %s31 = sshll.u32 %s1, 4
      %s32 = int_to_ptr.vmem [resolvable:$true] %s31
      %34 = dma.vmem_to_smem %s32, 16, [#allocation5], [#allocation6]
    $region9: #{tpu_custom_call.1} parent=1 // pred_fallthru
      _
    // Predicated region
    $region10: #{tpu_custom_call.1} parent=1 // pred_check
      _
    $region11: #{tpu_custom_call.1} parent=1 // pred_check_branch
      %36 = sbr.rel (0) target = $region13
    $region12: #{tpu_custom_call.1} parent=1 // pred_region
      _
    $region13: #{tpu_custom_call.1} parent=1 // pred_fallthru
      _
    // Predicated region
    $region14: #{tpu_custom_call.1} parent=1 // pred_check
      _
    $region15: #{tpu_custom_call.1} parent=1 // pred_check_branch
      %38 = sbr.rel (0) target = $region17
    $region16: #{tpu_custom_call.1} parent=1 // pred_region
      _
    $region17: #{tpu_custom_call.1} parent=1 // pred_fallthru
      _
    // Predicated region
    $region18: #{tpu_custom_call.1} parent=1 // pred_check
      _
    $region19: #{tpu_custom_call.1} parent=1 // pred_check_branch
      %40 = sbr.rel (0) target = $region21
    $region20: #{tpu_custom_call.1} parent=1 // pred_region
      _
    $region21: #{tpu_custom_call.1} parent=1 // pred_fallthru
      _
    // Predicated region
    $region22: #{tpu_custom_call.1} parent=1 // pred_check
      _
    $region23: #{tpu_custom_call.1} parent=1 // pred_check_branch
      %42 = sbr.rel (0) target = $region25
    $region24: #{tpu_custom_call.1} parent=1 // pred_region
      _
    $region25: #{tpu_custom_call.1} parent=1 // pred_fallthru
      _
    // Predicated region
    $region26: #{tpu_custom_call.1} parent=1 // pred_check
      _
    $region27: #{tpu_custom_call.1} parent=1 // pred_check_branch
      %44 = sbr.rel (0) target = $region29
    $region28: #{tpu_custom_call.1} parent=1 // pred_region
      _
    $region29: #{tpu_custom_call.1} parent=1 // pred_fallthru
      _
    // Predicated region
    $region30: #{tpu_custom_call.1} parent=1 // pred_check
      _
    $region31: #{tpu_custom_call.1} parent=1 // pred_check_branch
      %46 = sbr.rel (0) target = $region33
    $region32: #{tpu_custom_call.1} parent=1 // pred_region
      %47 = dma.done [#allocation4], 16
    $region33: #{tpu_custom_call.1} parent=1 // pred_fallthru
      _
    // Predicated region
    $region34: #{tpu_custom_call.1} parent=1 // pred_check
      _
    $region35: #{tpu_custom_call.1} parent=1 // pred_check_branch
      %49 = sbr.rel (0) target = $region37
    $region36: #{tpu_custom_call.1} parent=1 // pred_region
      %50 = dma.done [#allocation6], 16
    $region37: #{tpu_custom_call.1} parent=1 // pred_fallthru
      _
    %51 = sfence
    %v52 = vld [vmem:[%s2] sm:$0x1]
    %s53 = sld [smem:[#allocation2]]
    %v54 = vstv %s53
    %v55 = vsub.f32 %v52, %v54
    %s56 = sld [smem:[#allocation5]]
    %v57 = vstv %s56
    %v58 = vmul.f32 %v55, %v57
    %v59 = vld [vmem:[%s2 + $0x1] sm:$0x1]
    %s60 = sld [smem:[#allocation2 + $0x1]]
    %v61 = vstv %s60
    %v62 = vsub.f32 %v59, %v61
    %s63 = sld [smem:[#allocation5 + $0x1]]
    %v64 = vstv %s63
    %v65 = vmul.f32 %v62, %v64
    %v66 = vld [vmem:[%s2 + $0x2] sm:$0x1]
    %s67 = sld [smem:[#allocation2 + $0x2]]
    %v68 = vstv %s67
    %v69 = vsub.f32 %v66, %v68
    %s70 = sld [smem:[#allocation5 + $0x2]]
    %v71 = vstv %s70
    %v72 = vmul.f32 %v69, %v71
    %v73 = vfloor.f32 %v58
    %v74 = vfloor.f32 %v65
    %v75 = vfloor.f32 %v72
    %v76 = vsub.f32 %v58, %v73
    %v77 = vsub.f32 %v65, %v74
    %v78 = vsub.f32 %v72, %v75
    %v79 = vcvt.f32.s32.to.zero.pseudo %v73
    %v80 = vcvt.f32.s32.to.zero.pseudo %v74
    %v81 = vcvt.f32.s32.to.zero.pseudo %v75
    %v82 = vmul.u32 %v80, 8
    %v83 = vadd.s32 %v82, %v81
    %v84 = vld [vmem:[%s4] sm:$0xff]
    %v85 = vld [vmem:[%s4 + $0x8] sm:$0xff]
    %v86 = vld [vmem:[%s4 + $0x10] sm:$0xff]
    %v87 = vld [vmem:[%s4 + $0x18] sm:$0xff]
    %v88 = vld [vmem:[%s4 + $0x20] sm:$0xff]
    %v89 = vld [vmem:[%s4 + $0x28] sm:$0xff]
    %v90 = vld [vmem:[%s4 + $0x30] sm:$0xff]
    %91 = vset.pattern.permute.xlu0 0
    %92 = vperm.xlu0 %91, %v84
    %v93 = vpop.permute.xlu0 %92
    %94 = vset.pattern.permute.xlu0 0
    %95 = vperm.xlu0 %94, %v85
    %v96 = vpop.permute.xlu0 %95
    %97 = vset.pattern.permute.xlu0 0
    %98 = vperm.xlu0 %97, %v86
    %v99 = vpop.permute.xlu0 %98
    %100 = vset.pattern.permute.xlu0 0
    %101 = vperm.xlu0 %100, %v87
    %v102 = vpop.permute.xlu0 %101
    %103 = vset.pattern.permute.xlu0 0
    %104 = vperm.xlu0 %103, %v88
    %v105 = vpop.permute.xlu0 %104
    %106 = vset.pattern.permute.xlu0 0
    %107 = vperm.xlu0 %106, %v89
    %v108 = vpop.permute.xlu0 %107
    %109 = vset.pattern.permute.xlu0 0
    %110 = vperm.xlu0 %109, %v90
    %v111 = vpop.permute.xlu0 %110
    %v112 = vlaneseq
    %v113 = vshrl.u32 %v112, 7
    %v114 = vsub.s32 0, %v113
    %v115 = vrot.slane %v83, %v114
    %v116 = vsub.s32 %v93, %v115
    %v117 = vsub.s32 %v96, %v115
    %v118 = vsub.s32 %v99, %v115
    %v119 = vsub.s32 %v102, %v115
    %v120 = vsub.s32 %v105, %v115
    %v121 = vsub.s32 %v108, %v115
    %v122 = vsub.s32 %v111, %v115
    %vm123 = vcmp.ge.s32.totalorder %v80, 0
    %vm124 = vcmp.lt.s32.totalorder %v80, 7
    %vm125 = vmand %vm123, %vm124
    %v126 = vadd.s32 %v80, 1
    %vm127 = vcmp.ge.s32.totalorder %v126, 0
    %vm128 = vcmp.lt.s32.totalorder %v126, 7
    %vm129 = vmand %vm127, %vm128
    %vm130 = vcmp.ge.s32.totalorder %v81, 0
    %vm131 = vcmp.lt.s32.totalorder %v81, 8
    %vm132 = vmand %vm130, %vm131
    %v133 = vadd.s32 %v81, 1
    %vm134 = vcmp.ge.s32.totalorder %v133, 0
    %vm135 = vcmp.lt.s32.totalorder %v133, 8
    %vm136 = vmand %vm134, %vm135
    %v137 = vsub.f32 1.0, %v77
    %v138 = vsub.f32 1.0, %v78
    %v139 = vmul.f32 %v137, %v138
    %vm140 = vmand %vm125, %vm132
    %v141 = vsel %vm140, 1, 0
    %v142 = vcvt.s32.f32 %v141
    %v143 = vmul.f32 %v139, %v142
    %v144 = vmul.f32 %v137, %v78
    %vm145 = vmand %vm125, %vm136
    %v146 = vsel %vm145, 1, 0
    %v147 = vcvt.s32.f32 %v146
    %v148 = vmul.f32 %v144, %v147
    %v149 = vmul.f32 %v77, %v138
    %vm150 = vmand %vm129, %vm132
    %v151 = vsel %vm150, 1, 0
    %v152 = vcvt.s32.f32 %v151
    %v153 = vmul.f32 %v149, %v152
    %v154 = vmul.f32 %v77, %v78
    %vm155 = vmand %vm129, %vm136
    %v156 = vsel %vm155, 1, 0
    %v157 = vcvt.s32.f32 %v156
    %v158 = vmul.f32 %v154, %v157
    %vm159 = vcmp.eq.s32.totalorder %v116, 0
    %vm160 = vcmp.eq.s32.totalorder %v117, 0
    %vm161 = vcmp.eq.s32.totalorder %v118, 0
    %vm162 = vcmp.eq.s32.totalorder %v119, 0
    %vm163 = vcmp.eq.s32.totalorder %v120, 0
    %vm164 = vcmp.eq.s32.totalorder %v121, 0
    %vm165 = vcmp.eq.s32.totalorder %v122, 0
    %vm166 = vcmp.eq.s32.totalorder %v116, 1
    %vm167 = vcmp.eq.s32.totalorder %v117, 1
    %vm168 = vcmp.eq.s32.totalorder %v118, 1
    %vm169 = vcmp.eq.s32.totalorder %v119, 1
    %vm170 = vcmp.eq.s32.totalorder %v120, 1
    %vm171 = vcmp.eq.s32.totalorder %v121, 1
    %vm172 = vcmp.eq.s32.totalorder %v122, 1
    %v173 = vlaneseq
    %v174 = vshrl.u32 %v173, 7
    %v175 = vsub.s32 0, %v174
    %v176 = vrot.slane %v148, %v175
    %v177 = vsel %vm166, %v176, 0.0
    %v178 = vsel %vm167, %v176, 0.0
    %v179 = vsel %vm168, %v176, 0.0
    %v180 = vsel %vm169, %v176, 0.0
    %v181 = vsel %vm170, %v176, 0.0
    %v182 = vsel %vm171, %v176, 0.0
    %v183 = vsel %vm172, %v176, 0.0
    %v184 = vlaneseq
    %v185 = vshrl.u32 %v184, 7
    %v186 = vsub.s32 0, %v185
    %v187 = vrot.slane %v143, %v186
    %v188 = vsel %vm159, %v187, %v177
    %v189 = vsel %vm160, %v187, %v178
    %v190 = vsel %vm161, %v187, %v179
    %v191 = vsel %vm162, %v187, %v180
    %v192 = vsel %vm163, %v187, %v181
    %v193 = vsel %vm164, %v187, %v182
    %v194 = vsel %vm165, %v187, %v183
    %vm195 = vcmp.eq.s32.totalorder %v116, 8
    %vm196 = vcmp.eq.s32.totalorder %v117, 8
    %vm197 = vcmp.eq.s32.totalorder %v118, 8
    %vm198 = vcmp.eq.s32.totalorder %v119, 8
    %vm199 = vcmp.eq.s32.totalorder %v120, 8
    %vm200 = vcmp.eq.s32.totalorder %v121, 8
    %vm201 = vcmp.eq.s32.totalorder %v122, 8
    %vm202 = vcmp.eq.s32.totalorder %v116, 9
    %vm203 = vcmp.eq.s32.totalorder %v117, 9
    %vm204 = vcmp.eq.s32.totalorder %v118, 9
    %vm205 = vcmp.eq.s32.totalorder %v119, 9
    %vm206 = vcmp.eq.s32.totalorder %v120, 9
    %vm207 = vcmp.eq.s32.totalorder %v121, 9
    %vm208 = vcmp.eq.s32.totalorder %v122, 9
    %v209 = vlaneseq
    %v210 = vshrl.u32 %v209, 7
    %v211 = vsub.s32 0, %v210
    %v212 = vrot.slane %v158, %v211
    %v213 = vsel %vm202, %v212, 0.0
    %v214 = vsel %vm203, %v212, 0.0
    %v215 = vsel %vm204, %v212, 0.0
    %v216 = vsel %vm205, %v212, 0.0
    %v217 = vsel %vm206, %v212, 0.0
    %v218 = vsel %vm207, %v212, 0.0
    %v219 = vsel %vm208, %v212, 0.0
    %v220 = vlaneseq
    %v221 = vshrl.u32 %v220, 7
    %v222 = vsub.s32 0, %v221
    %v223 = vrot.slane %v153, %v222
    %v224 = vsel %vm195, %v223, %v213
    %v225 = vsel %vm196, %v223, %v214
    %v226 = vsel %vm197, %v223, %v215
    %v227 = vsel %vm198, %v223, %v216
    %v228 = vsel %vm199, %v223, %v217
    %v229 = vsel %vm200, %v223, %v218
    %v230 = vsel %vm201, %v223, %v219
    %v231 = vadd.f32 %v188, %v224
    %v232 = vadd.f32 %v189, %v225
    %v233 = vadd.f32 %v190, %v226
    %v234 = vadd.f32 %v191, %v227
    %v235 = vadd.f32 %v192, %v228
    %v236 = vadd.f32 %v193, %v229
    %v237 = vadd.f32 %v194, %v230
    %v238 = vld [vmem:[%s5] sm:$0xff]
    %v239 = vld [vmem:[%s5 + $0x8] sm:$0xff]
    %v240 = vld [vmem:[%s5 + $0x10] sm:$0xff]
    %241 = vset.pattern.permute.xlu0 0
    %242 = vperm.xlu0 %241, %v238
    %v243 = vpop.permute.xlu0 %242
    %244 = vset.pattern.permute.xlu0 0
    %245 = vperm.xlu0 %244, %v239
    %v246 = vpop.permute.xlu0 %245
    %247 = vset.pattern.permute.xlu0 0
    %248 = vperm.xlu0 %247, %v240
    %v249 = vpop.permute.xlu0 %248
    %v250 = vlaneseq
    %v251 = vshrl.u32 %v250, 7
    %v252 = vsub.s32 0, %v251
    %v253 = vrot.slane %v79, %v252
    %v254 = vsub.s32 %v243, %v253
    %v255 = vsub.s32 %v246, %v253
    %v256 = vsub.s32 %v249, %v253
    %vm257 = vcmp.ge.s32.totalorder %v79, 0
    %vm258 = vcmp.lt.s32.totalorder %v79, 6
    %vm259 = vmand %vm257, %vm258
    %v260 = vadd.s32 %v79, 1
    %vm261 = vcmp.ge.s32.totalorder %v260, 0
    %vm262 = vcmp.lt.s32.totalorder %v260, 6
    %vm263 = vmand %vm261, %vm262
    %v264 = vsub.f32 1.0, %v76
    %v265 = vsel %vm259, 1, 0
    %v266 = vcvt.s32.f32 %v265
    %v267 = vmul.f32 %v264, %v266
    %v268 = vsel %vm263, 1, 0
    %v269 = vcvt.s32.f32 %v268
    %v270 = vmul.f32 %v76, %v269
    %vm271 = vcmp.eq.s32.totalorder %v254, 0
    %vm272 = vcmp.eq.s32.totalorder %v255, 0
    %vm273 = vcmp.eq.s32.totalorder %v256, 0
    %vm274 = vcmp.eq.s32.totalorder %v254, 1
    %vm275 = vcmp.eq.s32.totalorder %v255, 1
    %vm276 = vcmp.eq.s32.totalorder %v256, 1
    %v277 = vlaneseq
    %v278 = vshrl.u32 %v277, 7
    %v279 = vsub.s32 0, %v278
    %v280 = vrot.slane %v270, %v279
    %v281 = vsel %vm274, %v280, 0.0
    %v282 = vsel %vm275, %v280, 0.0
    %v283 = vsel %vm276, %v280, 0.0
    %v284 = vlaneseq
    %v285 = vshrl.u32 %v284, 7
    %v286 = vsub.s32 0, %v285
    %v287 = vrot.slane %v267, %v286
    %v288 = vsel %vm271, %v287, %v281
    %v289 = vsel %vm272, %v287, %v282
    %v290 = vsel %vm273, %v287, %v283
    %v291 = vld [vmem:[%s3] sm:$0xff]
    %v292 = vld [vmem:[%s3 + $0x8] sm:$0xff]
    %v293 = vld [vmem:[%s3 + $0x10] sm:$0xff]
    %vm294 = vcmask 457728
    %v296 = vsel %vm294, %v291, 0
    %v299 = vsel %vm294, %v292, 0
    %v302 = vsel %vm294, %v293, 0
    %304 = vmatprep.subr.mxu0 0.0
    %305 = vmatpush1.msra.mxu0 %v231
    %306 = vmatprep.subr.mxu0 0.0
    %307 = vmatpush1.msra.mxu0 %v232
    %308 = vmatprep.subr.mxu0 0.0
    %309 = vmatpush1.msra.mxu0 %v233
    %310 = vmatprep.subr.mxu0 0.0
    %311 = vmatpush1.msra.mxu0 %v234
    %312 = vmatprep.subr.mxu0 0.0
    %313 = vmatpush1.msra.mxu0 %v235
    %314 = vmatprep.subr.mxu0 0.0
    %315 = vmatpush1.msra.mxu0 %v236
    %316 = vmatprep.subr.mxu0 0.0
    %317 = vmatpush1.msra.mxu0 %v237
    %318 = vmatprep.subr.mxu0 0.0
    %319 = vmatpush1.msra.mxu0 0.0
    %320 = vmatprep.subr.mxu0 0.0
    %321 = vmatpush1.msra.mxu0 0.0
    %322 = vmatprep.subr.mxu0 0.0
    %323 = vmatpush1.msra.mxu0 0.0
    %324 = vmatprep.subr.mxu0 0.0
    %325 = vmatpush1.msra.mxu0 0.0
    %326 = vmatprep.subr.mxu0 0.0
    %327 = vmatpush1.msra.mxu0 0.0
    %328 = vmatprep.subr.mxu0 0.0
    %329 = vmatpush1.msra.mxu0 0.0
    %330 = vmatprep.subr.mxu0 0.0
    %331 = vmatpush1.msra.mxu0 0.0
    %332 = vmatprep.subr.mxu0 0.0
    %333 = vmatpush1.msra.mxu0 0.0
    %334 = vmatprep.subr.mxu0 0.0
    %335 = vmatpush1.msra.mxu0 0.0
    %336 = vmatprep.subr.mxu0 0.0
    %337 = vmatpush1.msra.mxu0 0.0
    %338 = vmatprep.subr.mxu0 0.0
    %339 = vmatpush1.msra.mxu0 0.0
    %340 = vmatprep.subr.mxu0 0.0
    %341 = vmatpush1.msra.mxu0 0.0
    %342 = vmatprep.subr.mxu0 0.0
    %343 = vmatpush1.msra.mxu0 0.0
    %344 = vmatprep.subr.mxu0 0.0
    %345 = vmatpush1.msra.mxu0 0.0
    %346 = vmatprep.subr.mxu0 0.0
    %347 = vmatpush1.msra.mxu0 0.0
    %348 = vmatprep.subr.mxu0 0.0
    %349 = vmatpush1.msra.mxu0 0.0
    %350 = vmatprep.subr.mxu0 0.0
    %351 = vmatpush1.msra.mxu0 0.0
    %352 = vmatprep.subr.mxu0 0.0
    %353 = vmatpush1.msra.mxu0 0.0
    %354 = vmatprep.subr.mxu0 0.0
    %355 = vmatpush1.msra.mxu0 0.0
    %356 = vmatprep.subr.mxu0 0.0
    %357 = vmatpush1.msra.mxu0 0.0
    %358 = vmatprep.subr.mxu0 0.0
    %359 = vmatpush1.msra.mxu0 0.0
    %360 = vmatprep.subr.mxu0 0.0
    %361 = vmatpush1.msra.mxu0 0.0
    %362 = vmatprep.subr.mxu0 0.0
    %363 = vmatpush1.msra.mxu0 0.0
    %364 = vmatprep.subr.mxu0 0.0
    %365 = vmatpush1.msra.mxu0 0.0
    %366 = vmatprep.subr.mxu0 0.0
    %367 = vmatpush1.msra.mxu0 0.0
    %368 = vmatprep.mubr.f32.mxu0 0.0
    %369 = vmatmul.mubr.f32.gmra.mrb[0].mxu0 %v296
    %v370 = vpop.f32.mrb[0].mxu0
    %v371 = vadd.f32 0.0, %v370
    %v372 = vpop.f32.mrb[0].mxu0
    %373 = vmatprep.mubr.f32.mxu0 0.0
    %374 = vmatmul.mubr.f32.gmra.mrb[0].mxu0 %v299
    %v375 = vpop.f32.mrb[0].mxu0
    %v376 = vadd.f32 0.0, %v375
    %v377 = vpop.f32.mrb[0].mxu0
    %378 = vmatprep.mubr.f32.mxu0 0.0
    %379 = vmatmul.mubr.f32.gmra.mrb[0].mxu0 %v302
    %v380 = vpop.f32.mrb[0].mxu0
    %v381 = vadd.f32 0.0, %v380
    %v382 = vpop.f32.mrb[0].mxu0
    %383 = vdwg.mxu0
    %v384 = vmul.f32 %v371, %v288
    %v385 = vmul.f32 %v376, %v289
    %v386 = vmul.f32 %v381, %v290
    %v387 = vld [vmem:[%s6] sm:$0xf]
    %vm388 = vcmask 195584
    %v390 = vsel %vm388, %v387, 0
    %392 = vmatprep.subr.mxu0 0.0
    %393 = vmatpush1.msra.mxu0 %v384
    %394 = vmatprep.subr.mxu0 0.0
    %395 = vmatpush1.msra.mxu0 %v385
    %396 = vmatprep.subr.mxu0 0.0
    %397 = vmatpush1.msra.mxu0 %v386
    %398 = vmatprep.subr.mxu0 0.0
    %399 = vmatpush1.msra.mxu0 0.0
    %400 = vmatprep.subr.mxu0 0.0
    %401 = vmatpush1.msra.mxu0 0.0
    %402 = vmatprep.subr.mxu0 0.0
    %403 = vmatpush1.msra.mxu0 0.0
    %404 = vmatprep.subr.mxu0 0.0
    %405 = vmatpush1.msra.mxu0 0.0
    %406 = vmatprep.subr.mxu0 0.0
    %407 = vmatpush1.msra.mxu0 0.0
    %408 = vmatprep.subr.mxu0 0.0
    %409 = vmatpush1.msra.mxu0 0.0
    %410 = vmatprep.subr.mxu0 0.0
    %411 = vmatpush1.msra.mxu0 0.0
    %412 = vmatprep.subr.mxu0 0.0
    %413 = vmatpush1.msra.mxu0 0.0
    %414 = vmatprep.subr.mxu0 0.0
    %415 = vmatpush1.msra.mxu0 0.0
    %416 = vmatprep.subr.mxu0 0.0
    %417 = vmatpush1.msra.mxu0 0.0
    %418 = vmatprep.subr.mxu0 0.0
    %419 = vmatpush1.msra.mxu0 0.0
    %420 = vmatprep.subr.mxu0 0.0
    %421 = vmatpush1.msra.mxu0 0.0
    %422 = vmatprep.subr.mxu0 0.0
    %423 = vmatpush1.msra.mxu0 0.0
    %424 = vmatprep.subr.mxu0 0.0
    %425 = vmatpush1.msra.mxu0 0.0
    %426 = vmatprep.subr.mxu0 0.0
    %427 = vmatpush1.msra.mxu0 0.0
    %428 = vmatprep.subr.mxu0 0.0
    %429 = vmatpush1.msra.mxu0 0.0
    %430 = vmatprep.subr.mxu0 0.0
    %431 = vmatpush1.msra.mxu0 0.0
    %432 = vmatprep.subr.mxu0 0.0
    %433 = vmatpush1.msra.mxu0 0.0
    %434 = vmatprep.subr.mxu0 0.0
    %435 = vmatpush1.msra.mxu0 0.0
    %436 = vmatprep.subr.mxu0 0.0
    %437 = vmatpush1.msra.mxu0 0.0
    %438 = vmatprep.subr.mxu0 0.0
    %439 = vmatpush1.msra.mxu0 0.0
    %440 = vmatprep.subr.mxu0 0.0
    %441 = vmatpush1.msra.mxu0 0.0
    %442 = vmatprep.subr.mxu0 0.0
    %443 = vmatpush1.msra.mxu0 0.0
    %444 = vmatprep.subr.mxu0 0.0
    %445 = vmatpush1.msra.mxu0 0.0
    %446 = vmatprep.subr.mxu0 0.0
    %447 = vmatpush1.msra.mxu0 0.0
    %448 = vmatprep.subr.mxu0 0.0
    %449 = vmatpush1.msra.mxu0 0.0
    %450 = vmatprep.subr.mxu0 0.0
    %451 = vmatpush1.msra.mxu0 0.0
    %452 = vmatprep.subr.mxu0 0.0
    %453 = vmatpush1.msra.mxu0 0.0
    %454 = vmatprep.subr.mxu0 0.0
    %455 = vmatpush1.msra.mxu0 0.0
    %456 = vmatprep.mubr.f32.mxu0 0.0
    %457 = vmatmul.mubr.f32.gmra.mrb[0].mxu0 %v390
    %v458 = vpop.f32.mrb[0].mxu0
    %v459 = vadd.f32 0.0, %v458
    %v460 = vpop.f32.mrb[0].mxu0
    %461 = vdwg.mxu0
    %462 = vst [vmem:[#allocation7] sm:$0xf] %v459
    // Predicated region
    $region38: #{tpu_custom_call.1} parent=1 // pred_check
      _
    $region39: #{tpu_custom_call.1} parent=1 // pred_check_branch
      %464 = sbr.rel (0) target = $region41
    $region40: #{tpu_custom_call.1} parent=1 // pred_region
      %s466 = ssub.s32 64, 64
      %467 = vsyncadd [#allocation3], %s466
      %s469 = sshll.u32 [#allocation7], 4
      %s470 = int_to_ptr.vmem [resolvable:$true] %s469
      %472 = dma.vmem_to_hbm [thread:$0]  %s470, 64, %s7, [#allocation3]
    $region41: #{tpu_custom_call.1} parent=1 // pred_fallthru
      _
    // Predicated region
    $region42: #{tpu_custom_call.1} parent=1 // pred_check
      _
    $region43: #{tpu_custom_call.1} parent=1 // pred_check_branch
      %474 = sbr.rel (0) target = $region45
    $region44: #{tpu_custom_call.1} parent=1 // pred_region
      %475 = dma.done [#allocation3], 64
    $region45: #{tpu_custom_call.1} parent=1 // pred_fallthru
      _
    %476 = vsyncpa [#allocation3], 1
    %477 = vsyncpa [#allocation4], 1
    %478 = vsyncpa [#allocation6], 1

</llo_original>
